<compile_context>
chip_gen: v5e
topology: v5e:2x2
jax: 0.10.0
libtpu: 0.0.40
codegen_flags: <defaults>
</compile_context>

<pallas_src>
import functools

import jax
import jax.numpy as jnp
from jax import lax
from jax.experimental import pallas as pl
from jax.experimental.pallas import tpu as pltpu


# ---------------------------------------------------------------------------
# Kernel 1: per-node projections for all heads (row-tiled over nodes).
#   h      = x @ W_all                     (TM, head*F_hid)   one MXU matmul
#   scores = h @ A_blk                     (TM, 2*head)       one MXU matmul
#   hp_aug = per-head [h_head | 1] layout  (TM, head*(F_hid+1))
# The trailing ones column per head later turns the softmax row-sum into a free
# extra MXU output column inside the attention kernel.
# ---------------------------------------------------------------------------
def _proj_kernel(x_ref, w_all_ref, a_blk_ref, hp_ref, s_ref, *, head, f_hid):
    x = x_ref[...].astype(jnp.float32)
    h = jnp.dot(x, w_all_ref[...], preferred_element_type=jnp.float32)
    s_ref[...] = jnp.dot(h, a_blk_ref[...], preferred_element_type=jnp.float32)
    fa = f_hid + 1
    ones = jnp.ones((h.shape[0], 1), jnp.float32)
    for hd in range(head):                                          # static unroll
        hp_ref[:, hd * fa:hd * fa + f_hid] = h[:, hd * f_hid:(hd + 1) * f_hid]
        hp_ref[:, hd * fa + f_hid:(hd + 1) * fa] = ones


# ---------------------------------------------------------------------------
# Kernel 2: layer-1 multi-head attention + fused ELU, tiled over dst rows.
# ---------------------------------------------------------------------------
def _attn1_kernel(s_src_ref, s_dstT_ref, hp_ref, adj_ref, o_ref,
                  *, alpha, head, f_hid):
    fa = f_hid + 1
    hf = head * f_hid
    # adj arrives as int8 {0,1}: one cast per tile, reused by every head.
    maskf = adj_ref[...].astype(jnp.float32)                        # (TM, N)

    for hd in range(head):                                          # static unroll
        col = s_src_ref[:, hd:hd + 1]                               # (TM, 1)
        row = s_dstT_ref[hd:hd + 1, :]                              # (1, N)  pre-transposed
        e = col + row                                               # (TM, N)
        e = jnp.maximum(e, alpha * e)                               # LeakyReLU
        # cheap valid upper bound of the row max (softmax is shift invariant)
        m = jnp.maximum(col, 0.0) + jnp.maximum(
            jnp.max(row, axis=1, keepdims=True), 0.0)               # (TM, 1)
        p = jnp.exp(e - m) * maskf                                  # unnormalised probs
        # p @ [h_head | 1]: last output column is the softmax denominator.
        h_blk = hp_ref[:, hd * fa:(hd + 1) * fa]                    # (N, F_hid+1)
        acc = jnp.dot(p, h_blk, preferred_element_type=jnp.float32)  # (TM, F_hid+1)
        den = acc[:, f_hid:fa]
        inv = pl.reciprocal(jnp.where(den > 0.0, den, 1.0))         # guard empty rows
        out_hd = acc[:, :f_hid] * inv
        # fused F.elu (exp(x)-1 ~= expm1 to ~1 ulp in this range)
        out_hd = jnp.where(out_hd > 0.0, out_hd, jnp.exp(out_hd) - 1.0)
        o_ref[:, hd * f_hid:(hd + 1) * f_hid] = out_hd              # bounds live range
    # trailing ones column lets layer 2 reuse the same MXU row-sum trick
    o_ref[:, hf:hf + 1] = jnp.ones((o_ref.shape[0], 1), o_ref.dtype)


# ---------------------------------------------------------------------------
# Kernel 3: layer-2 GATConv + log_softmax, tiled over destination rows.
# h1_aug already carries a trailing ones column; w2_aug routes it through so
# h1_aug @ w2_aug = [h2 | 1] and the softmax row-sum again comes off the MXU.
# ---------------------------------------------------------------------------
def _attn2_kernel(h1t_ref, h1_ref, adj_ref, w2_ref, a2_ref, o_ref, *, alpha, f_out):
    maskf = adj_ref[...].astype(jnp.float32)                        # (TM, N)
    h2_all = jnp.dot(h1_ref[...], w2_ref[...],
                     preferred_element_type=jnp.float32)            # (N, F_out+1)
    h2_t = jnp.dot(h1t_ref[...], w2_ref[...],
                   preferred_element_type=jnp.float32)              # (TM, F_out+1)
    # qk^T-style dot_generals avoid any (N,1)->(1,N) transpose.
    s_src = lax.dot_general(h2_t, a2_ref[0:1, :], (((1,), (1,)), ((), ())),
                            preferred_element_type=jnp.float32)     # (TM, 1)
    s_dst = lax.dot_general(a2_ref[1:2, :], h2_all, (((1,), (1,)), ((), ())),
                            preferred_element_type=jnp.float32)     # (1, N)
    e = s_src + s_dst
    e = jnp.maximum(e, alpha * e)                                   # LeakyReLU
    m = jnp.maximum(s_src, 0.0) + jnp.maximum(
        jnp.max(s_dst, axis=1, keepdims=True), 0.0)
    p = jnp.exp(e - m) * maskf
    acc = jnp.dot(p, h2_all, preferred_element_type=jnp.float32)    # (TM, F_out+1)
    den = acc[:, f_out:f_out + 1]
    inv = pl.reciprocal(jnp.where(den > 0.0, den, 1.0))
    out = acc[:, :f_out] * inv                                      # (TM, F_out)
    # F.log_softmax(dim=1) over the small feature axis
    z = out - jnp.max(out, axis=1, keepdims=True)
    o_ref[...] = (z - jnp.log(jnp.sum(jnp.exp(z), axis=1, keepdims=True))
                  ).astype(o_ref.dtype)


def _compiler_params(est_bytes):
    vmem = int(min(60 * 1024 * 1024, max(2 * est_bytes, 16 * 1024 * 1024)))
    return pltpu.CompilerParams(dimension_semantics=("parallel",),
                                vmem_limit_bytes=vmem)


def net_forward(x, adj, params, *, alpha, row_tile=None):
    """Forward pass of Net (eval mode) with row-tiled Pallas TPU kernels."""
    n, f_in = x.shape
    attentions = params["attentions"]
    head = len(attentions)
    f_hid = attentions[0][0].shape[1]
    hf = head * f_hid
    fa = f_hid + 1
    w2, a2 = params["conv2"]
    f_out = w2.shape[1]

    # destination-row tile (multiple of 32 so the int8 adj tile stays legal)
    if row_tile is None:
        row_tile = n
        for cand in (512, 256, 128, 64, 32):
            if n % cand == 0:
                row_tile = cand
                break
    if n % row_tile != 0 or (row_tile % 32 != 0 and row_tile != n):
        row_tile = n
    tm = row_tile
    n_tiles = n // tm

    # ---- one-time parameter packing (layout only) ----
    w_all = jnp.concatenate([w for (w, _) in attentions], axis=1).astype(jnp.float32)
    a_blk = jnp.zeros((hf, 2 * head), jnp.float32)
    for hd, (_, a) in enumerate(attentions):
        a_blk = a_blk.at[hd * f_hid:(hd + 1) * f_hid, hd].set(a[0, :f_hid])
        a_blk = a_blk.at[hd * f_hid:(hd + 1) * f_hid, head + hd].set(a[0, f_hid:])
    adj_i8 = (adj > 0).astype(jnp.int8)                  # 4x smaller than f32 adj
    # layer-2 weight augmented so the ones column of h1_aug propagates:
    #   h1_aug @ w2_aug = [h1 @ w2 | 1]
    w2_aug = jnp.zeros((hf + 1, f_out + 1), jnp.float32)
    w2_aug = w2_aug.at[:hf, :f_out].set(w2.astype(jnp.float32))
    w2_aug = w2_aug.at[hf, f_out].set(1.0)
    # layer-2 attention vectors as rows (src, dst), zero-padded to f_out+1
    a2p = jnp.zeros((2, f_out + 1), jnp.float32)
    a2p = a2p.at[0, :f_out].set(a2[0, :f_out])
    a2p = a2p.at[1, :f_out].set(a2[0, f_out:])

    f32 = 4

    # ---- kernel 1: projections ----
    est_a = f32 * (f_in * hf + hf * 2 * head
                   + 2 * tm * (f_in + head * fa + 2 * head) + 2 * tm * hf)
    hp_aug, s = pl.pallas_call(
        functools.partial(_proj_kernel, head=head, f_hid=f_hid),
        out_shape=(jax.ShapeDtypeStruct((n, head * fa), jnp.float32),
                   jax.ShapeDtypeStruct((n, 2 * head), jnp.float32)),
        grid=(n_tiles,),
        in_specs=[
            pl.BlockSpec((tm, f_in), lambda i: (i, 0)),
            pl.BlockSpec((f_in, hf), lambda i: (0, 0)),
            pl.BlockSpec((hf, 2 * head), lambda i: (0, 0)),
        ],
        out_specs=(pl.BlockSpec((tm, head * fa), lambda i: (i, 0)),
                   pl.BlockSpec((tm, 2 * head), lambda i: (i, 0))),
        compiler_params=_compiler_params(est_a),
    )(x.astype(jnp.float32), w_all, a_blk)

    # tiny layout plumbing outside the N^2 path: dst scores transposed ONCE here
    s_src = s[:, :head]                                  # (N, head)
    s_dstT = jnp.transpose(s[:, head:])                  # (head, N)

    # ---- kernel 2: layer-1 attention + ELU ----
    est_b = (f32 * (n * head * fa + 8 * n)
             + 2 * (f32 * tm * head + tm * n + f32 * tm * (hf + 1))
             + 4 * f32 * tm * n)
    cost_b = pl.CostEstimate(
        flops=int(head * (2 * n * n * fa + 6 * n * n)),
        transcendentals=int(head * n * n + n * hf),
        bytes_accessed=int(n * n + f32 * (n * head * fa + 3 * n * head + n * (hf + 1))))
    h1_aug = pl.pallas_call(
        functools.partial(_attn1_kernel, alpha=float(alpha), head=head, f_hid=f_hid),
        out_shape=jax.ShapeDtypeStruct((n, hf + 1), jnp.float32),
        grid=(n_tiles,),
        in_specs=[
            pl.BlockSpec((tm, head), lambda i: (i, 0)),          # s_src tile
            pl.BlockSpec((head, n), lambda i: (0, 0)),           # s_dstT (resident)
            pl.BlockSpec((n, head * fa), lambda i: (0, 0)),      # [h|1] per head (resident)
            pl.BlockSpec((tm, n), lambda i: (i, 0)),             # adj int8 row tile
        ],
        out_specs=pl.BlockSpec((tm, hf + 1), lambda i: (i, 0)),
        compiler_params=_compiler_params(est_b),
        cost_estimate=cost_b,
    )(s_src, s_dstT, hp_aug, adj_i8)

    # ---- kernel 3: layer-2 attention + log_softmax ----
    est_c = (f32 * (n * (hf + 1) + n * (f_out + 1))
             + 2 * (f32 * tm * (hf + 1) + tm * n + f32 * tm * f_out)
             + 4 * f32 * tm * n)
    cost_c = pl.CostEstimate(
        flops=int(2 * n * n * (f_out + 1) + 8 * n * n
                  + 4 * n * (hf + 1) * (f_out + 1)),
        transcendentals=int(n * n + n * f_out),
        bytes_accessed=int(n * n + f32 * (2 * n * (hf + 1) + n * f_out)))
    out = pl.pallas_call(
        functools.partial(_attn2_kernel, alpha=float(alpha), f_out=f_out),
        out_shape=jax.ShapeDtypeStruct((n, f_out), jnp.float32),
        grid=(n_tiles,),
        in_specs=[
            pl.BlockSpec((tm, hf + 1), lambda i: (i, 0)),        # h1_aug tile
            pl.BlockSpec((n, hf + 1), lambda i: (0, 0)),         # h1_aug full (resident)
            pl.BlockSpec((tm, n), lambda i: (i, 0)),             # adj int8 row tile
            pl.BlockSpec((hf + 1, f_out + 1), lambda i: (0, 0)), # w2_aug
            pl.BlockSpec((2, f_out + 1), lambda i: (0, 0)),      # a2 rows (src, dst)
        ],
        out_specs=pl.BlockSpec((tm, f_out), lambda i: (i, 0)),
        compiler_params=_compiler_params(est_c),
        cost_estimate=cost_c,
    )(h1_aug, h1_aug, adj_i8, w2_aug, a2p)
    return out


def _jax_reference(x, adj, params, *, alpha):
    def layer(x_, w, a):
        h = x_ @ w
        fo = w.shape[1]
        s_src = h @ a[0, :fo]
        s_dst = h @ a[0, fo:]
        e = s_src[:, None] + s_dst[None, :]
        e = jnp.where(e > 0, e, alpha * e)
        e = jnp.where(adj > 0, e, -9e15)
        att = jax.nn.softmax(e, axis=1)
        return att @ h

    h = jnp.concatenate([layer(x, w, a) for (w, a) in params["attentions"]], axis=1)
    h = jax.nn.elu(h)
    w2, a2 = params["conv2"]
    out = layer(h, w2, a2)
    return jax.nn.log_softmax(out, axis=1)


def _xavier(key, shape):
    fan_in, fan_out = shape[0], shape[-1]
    lim = (6.0 / (fan_in + fan_out)) ** 0.5
    return jax.random.uniform(key, shape, jnp.float32, -lim, lim)


if __name__ == "__main__":
    key = jax.random.PRNGKey(0)

    # module hyper-params (small, consistent with Net.__init__)
    N = 128
    in_feats = 32
    hidden_feats = 8
    out_feats = 8
    num_layers = 3
    dropout = 0.5              # unused at inference (identity)
    alpha = 0.2
    head = 4

    k_x, k_adj, *k_params = jax.random.split(
        key, 3 + 2 * head + 2 * (num_layers - 2) + 2)

    # node features
    x = jax.random.normal(k_x, (N, in_feats), jnp.float32)

    # dense symmetric adjacency with self-loops (so no row is fully masked)
    rnd = jax.random.uniform(k_adj, (N, N))
    adj = (rnd < 0.1).astype(jnp.float32)
    adj = jnp.clip(adj + adj.T + jnp.eye(N, dtype=jnp.float32), 0.0, 1.0)

    # parameters (deterministic xavier-uniform init)
    ki = iter(k_params)
    params = {
        "attentions": [
            (_xavier(next(ki), (in_feats, hidden_feats)),
             _xavier(next(ki), (1, 2 * hidden_feats)))
            for _ in range(head)
        ],
        # hidden_layers exist in __init__ but are unused in forward() — mirror that
        "hidden_layers": [
            (_xavier(next(ki), (hidden_feats * head, hidden_feats * head)),
             _xavier(next(ki), (1, 2 * hidden_feats * head)))
            for _ in range(num_layers - 2)
        ],
        "conv2": (
            _xavier(next(ki), (hidden_feats * head, out_feats)),
            _xavier(next(ki), (1, 2 * out_feats)),
        ),
    }

    out = net_forward(x, adj, params, alpha=alpha, row_tile=64)
    out = jax.block_until_ready(out)

    ref = _jax_reference(x, adj, params, alpha=alpha)
    assert out.shape == (N, out_feats)
    assert jnp.allclose(out, ref, atol=5e-4, rtol=5e-4), "mismatch vs JAX reference"

    print("KERNEL_OK")
</pallas_src>

<mosaic_0001>
module attributes {stable_mosaic.version = 11 : i64} {
  func.func @_proj_kernel(%arg0: i32, %arg1: memref<64x32xf32, #tpu.memory_space<vmem>>, %arg2: memref<32x32xf32, #tpu.memory_space<vmem>>, %arg3: memref<32x8xf32, #tpu.memory_space<vmem>>, %arg4: memref<64x36xf32, #tpu.memory_space<vmem>>, %arg5: memref<64x8xf32, #tpu.memory_space<vmem>>) attributes {dimension_semantics = [#tpu.dimension_semantics<parallel>], iteration_bounds = array<i64: 2>, scalar_prefetch = 0 : i64, scratch_operands = 0 : i64, tpu.core_type = #tpu.core_type<tc>, window_params = [{transform_indices = @transform_0, window_bounds = array<i64: 64, 32>}, {pipeline_mode = #tpu.pipeline_mode<synchronous>, transform_indices = @transform_1, window_bounds = array<i64: 32, 32>}, {pipeline_mode = #tpu.pipeline_mode<synchronous>, transform_indices = @transform_2, window_bounds = array<i64: 32, 8>}, {transform_indices = @transform_3, window_bounds = array<i64: 64, 36>}, {transform_indices = @transform_4, window_bounds = array<i64: 64, 8>}]} {
    %c0 = arith.constant 0 : index
    %c0_0 = arith.constant 0 : index
    %0 = vector.load %arg1[%c0, %c0_0] : memref<64x32xf32, #tpu.memory_space<vmem>>, vector<64x32xf32>
    %c0_1 = arith.constant 0 : index
    %c0_2 = arith.constant 0 : index
    %1 = vector.load %arg2[%c0_1, %c0_2] : memref<32x32xf32, #tpu.memory_space<vmem>>, vector<32x32xf32>
    %cst = arith.constant dense<0.000000e+00> : vector<64x32xf32>
    %2 = tpu.matmul %0, %1, %cst {dimension_numbers = #tpu.dot_dimension_numbers<[1], [0], [0], [1], [0, 0, 1, 1], [], []>} : vector<64x32xf32>, vector<32x32xf32>, vector<64x32xf32> -> vector<64x32xf32>
    %c0_3 = arith.constant 0 : index
    %c0_4 = arith.constant 0 : index
    %3 = vector.load %arg3[%c0_3, %c0_4] : memref<32x8xf32, #tpu.memory_space<vmem>>, vector<32x8xf32>
    %cst_5 = arith.constant dense<0.000000e+00> : vector<64x8xf32>
    %4 = tpu.matmul %2, %3, %cst_5 {dimension_numbers = #tpu.dot_dimension_numbers<[1], [0], [0], [1], [0, 0, 1, 1], [], []>} : vector<64x32xf32>, vector<32x8xf32>, vector<64x8xf32> -> vector<64x8xf32>
    %c0_6 = arith.constant 0 : index
    %c0_7 = arith.constant 0 : index
    %5 = vector.load %arg5[%c0_6, %c0_7] : memref<64x8xf32, #tpu.memory_space<vmem>>, vector<64x8xf32>
    tpu.vector_store %arg5[%c0_6, %c0_7], %4 {strides = array<i32>} : memref<64x8xf32, #tpu.memory_space<vmem>>, vector<64x8xf32>,
    %cst_8 = arith.constant 1.000000e+00 : f32
    %6 = vector.broadcast %cst_8 : f32 to vector<64x1xf32>
    %7 = vector.extract_strided_slice %2 {offsets = [0, 0], sizes = [64, 8], strides = [1, 1]} : vector<64x32xf32> to vector<64x8xf32>
    %c0_9 = arith.constant 0 : index
    %c0_10 = arith.constant 0 : index
    %8 = vector.load %arg4[%c0_9, %c0_10] : memref<64x36xf32, #tpu.memory_space<vmem>>, vector<64x8xf32>
    tpu.vector_store %arg4[%c0_9, %c0_10], %7 {strides = array<i32>} : memref<64x36xf32, #tpu.memory_space<vmem>>, vector<64x8xf32>,
    %c0_11 = arith.constant 0 : index
    %c8 = arith.constant 8 : index
    %9 = vector.load %arg4[%c0_11, %c8] : memref<64x36xf32, #tpu.memory_space<vmem>>, vector<64x1xf32>
    tpu.vector_store %arg4[%c0_11, %c8], %6 {strides = array<i32>} : memref<64x36xf32, #tpu.memory_space<vmem>>, vector<64x1xf32>,
    %10 = vector.extract_strided_slice %2 {offsets = [0, 8], sizes = [64, 8], strides = [1, 1]} : vector<64x32xf32> to vector<64x8xf32>
    %c0_12 = arith.constant 0 : index
    %c9 = arith.constant 9 : index
    %11 = vector.load %arg4[%c0_12, %c9] : memref<64x36xf32, #tpu.memory_space<vmem>>, vector<64x8xf32>
    tpu.vector_store %arg4[%c0_12, %c9], %10 {strides = array<i32>} : memref<64x36xf32, #tpu.memory_space<vmem>>, vector<64x8xf32>,
    %c0_13 = arith.constant 0 : index
    %c17 = arith.constant 17 : index
    %12 = vector.load %arg4[%c0_13, %c17] : memref<64x36xf32, #tpu.memory_space<vmem>>, vector<64x1xf32>
    tpu.vector_store %arg4[%c0_13, %c17], %6 {strides = array<i32>} : memref<64x36xf32, #tpu.memory_space<vmem>>, vector<64x1xf32>,
    %13 = vector.extract_strided_slice %2 {offsets = [0, 16], sizes = [64, 8], strides = [1, 1]} : vector<64x32xf32> to vector<64x8xf32>
    %c0_14 = arith.constant 0 : index
    %c18 = arith.constant 18 : index
    %14 = vector.load %arg4[%c0_14, %c18] : memref<64x36xf32, #tpu.memory_space<vmem>>, vector<64x8xf32>
    tpu.vector_store %arg4[%c0_14, %c18], %13 {strides = array<i32>} : memref<64x36xf32, #tpu.memory_space<vmem>>, vector<64x8xf32>,
    %c0_15 = arith.constant 0 : index
    %c26 = arith.constant 26 : index
    %15 = vector.load %arg4[%c0_15, %c26] : memref<64x36xf32, #tpu.memory_space<vmem>>, vector<64x1xf32>
    tpu.vector_store %arg4[%c0_15, %c26], %6 {strides = array<i32>} : memref<64x36xf32, #tpu.memory_space<vmem>>, vector<64x1xf32>,
    %16 = vector.extract_strided_slice %2 {offsets = [0, 24], sizes = [64, 8], strides = [1, 1]} : vector<64x32xf32> to vector<64x8xf32>
    %c0_16 = arith.constant 0 : index
    %c27 = arith.constant 27 : index
    %17 = vector.load %arg4[%c0_16, %c27] : memref<64x36xf32, #tpu.memory_space<vmem>>, vector<64x8xf32>
    tpu.vector_store %arg4[%c0_16, %c27], %16 {strides = array<i32>} : memref<64x36xf32, #tpu.memory_space<vmem>>, vector<64x8xf32>,
    %c0_17 = arith.constant 0 : index
    %c35 = arith.constant 35 : index
    %18 = vector.load %arg4[%c0_17, %c35] : memref<64x36xf32, #tpu.memory_space<vmem>>, vector<64x1xf32>
    tpu.vector_store %arg4[%c0_17, %c35], %6 {strides = array<i32>} : memref<64x36xf32, #tpu.memory_space<vmem>>, vector<64x1xf32>,
    return
  }
  func.func @transform_0(%arg0: i32) -> (i32, i32) {
    %c0_i32 = arith.constant 0 : i32
    %c0_i32_0 = arith.constant 0 : i32
    return %arg0, %c0_i32 : i32, i32
  }
  func.func @transform_1(%arg0: i32) -> (i32, i32) {
    %c0_i32 = arith.constant 0 : i32
    %c0_i32_0 = arith.constant 0 : i32
    %c0_i32_1 = arith.constant 0 : i32
    return %c0_i32, %c0_i32_0 : i32, i32
  }
  func.func @transform_2(%arg0: i32) -> (i32, i32) {
    %c0_i32 = arith.constant 0 : i32
    %c0_i32_0 = arith.constant 0 : i32
    %c0_i32_1 = arith.constant 0 : i32
    return %c0_i32, %c0_i32_0 : i32, i32
  }
  func.func @transform_3(%arg0: i32) -> (i32, i32) {
    %c0_i32 = arith.constant 0 : i32
    %c0_i32_0 = arith.constant 0 : i32
    return %arg0, %c0_i32 : i32, i32
  }
  func.func @transform_4(%arg0: i32) -> (i32, i32) {
    %c0_i32 = arith.constant 0 : i32
    %c0_i32_0 = arith.constant 0 : i32
    return %arg0, %c0_i32 : i32, i32
  }
}

</mosaic_0001>

<llo_original>
// kernel: tpu_custom_call.1
$region0: #{tpu_custom_call.1}
  #allocation0 [shape = 'u32[]', space=smem, size = 0x4, offset = 0x4, fixed_abs, tag = 'smem constant byte address 0x4 - core index']
  #allocation1 [shape = 'u32[72,128]{1,0:T(1,128)}', space=vmem, size = 0x9000, scoped, tag = 'internal scratch']
  %s0 = inlined_call_operand.vmem [shape: f32[128,32], index: 0, kind: input, shape index: {}]
  %s1 = inlined_call_operand.vmem [shape: f32[32,32], index: 1, kind: input, shape index: {}]
  %s2 = inlined_call_operand.vmem [shape: f32[32,8], index: 2, kind: input, shape index: {}]
  %s3 = inlined_call_operand.vmem [shape: f32[128,36], index: 3, kind: output, shape index: {0}]
  %s4 = inlined_call_operand.vmem [shape: f32[128,8], index: 4, kind: output, shape index: {1}]
  %5 = xla_tuple %s3, %s4
  %s6 = sld [smem:[#allocation0]]
  $region53: #{tpu_custom_call.1} parent=0
    _
  %s8 = ssub.s32 1, %s6
  %s9 = scalar_select 0, %s8, %s6
  loop: start=0, step=1, limit=4
  $region2: #{tpu_custom_call.1} parent=0 // loop_pre_header
    _
  $region3: #{tpu_custom_call.1} parent=0 // loop_header
    %s11 = sphi 0, %s15
    %p12 = scmp.ge.s32.totalorder %s11, 4
    %s21 = sphi 0, %s23
    %s24 = sphi 0, %s21
    %s25 = sphi 0, %s24
    %s41 = sphi 0, %s25
    %s45 = sphi 0, %s45
    %s47 = sphi 0, %s45
    %s48 = sphi 0, %s47
    %s62 = sphi 0, %s48
    %s66 = sphi 0, %s66
    %s68 = sphi 0, %s66
    %s69 = sphi 0, %s68
    %s83 = sphi 0, %s69
    %s89 = sphi 0, %s91
    %s92 = sphi 0, %s89
    %s93 = sphi 0, %s92
    %s109 = sphi 0, %s93
    %s115 = sphi 0, %s117
    %s118 = sphi 0, %s115
    %s119 = sphi 0, %s118
    %s135 = sphi 0, %s119
  $region4: #{tpu_custom_call.1} parent=0 // loop_header_branch
    %14 = sbr.rel (%p12) target = $region8
  $region5: #{tpu_custom_call.1} parent=0 // loop_body
    %s16 = ssub.s32 %s11, 1
    %s17 = ssub.s32 %s11, 2
    %s18 = sadd.s32 %s11, 1
    %s19 = ssub.s32 %s11, %s18
    %p20 = scmp.eq.s32.totalorder %s19, 0
    %s22 = sadd.s32 %s21, 1
    %s23 = scalar_select %p20, %s21, %s22
    %p26 = pneg %p20
    %p27 = scmp.eq.s32.totalorder %s11, 1
    %p28 = por %p26, %p27
    %p29 = scmp.ne.s32.totalorder %s21, %s24
    %p30 = scmp.eq.s32.totalorder %s11, 0
    %p31 = por %p29, %p30
    %p32 = scmp.ne.s32.totalorder %s21, %s24
    %p33 = scmp.eq.s32.totalorder %s16, 1
    %p34 = por %p32, %p33
    %p35 = scmp.ne.s32.totalorder %s24, %s25
    %p36 = scmp.eq.s32.totalorder %s16, 0
    %p37 = por %p35, %p36
    %p38 = scmp.ne.s32.totalorder %s24, %s25
    %p39 = scmp.eq.s32.totalorder %s17, 1
    %p40 = por %p38, %p39
    %p42 = scmp.ne.s32.totalorder %s25, %s41
    %p43 = scmp.eq.s32.totalorder %s17, 0
    %p44 = por %p42, %p43
    %s46 = sadd.s32 %s45, 1
    %p49 = scmp.eq.s32.totalorder %s11, 1
    %p50 = scmp.ne.s32.totalorder %s45, %s47
    %p51 = scmp.eq.s32.totalorder %s11, 0
    %p52 = por %p50, %p51
    %p53 = scmp.ne.s32.totalorder %s45, %s47
    %p54 = scmp.eq.s32.totalorder %s16, 1
    %p55 = por %p53, %p54
    %p56 = scmp.ne.s32.totalorder %s47, %s48
    %p57 = scmp.eq.s32.totalorder %s16, 0
    %p58 = por %p56, %p57
    %p59 = scmp.ne.s32.totalorder %s47, %s48
    %p60 = scmp.eq.s32.totalorder %s17, 1
    %p61 = por %p59, %p60
    %p63 = scmp.ne.s32.totalorder %s48, %s62
    %p64 = scmp.eq.s32.totalorder %s17, 0
    %p65 = por %p63, %p64
    %s67 = sadd.s32 %s66, 1
    %p70 = scmp.eq.s32.totalorder %s11, 1
    %p71 = scmp.ne.s32.totalorder %s66, %s68
    %p72 = scmp.eq.s32.totalorder %s11, 0
    %p73 = por %p71, %p72
    %p74 = scmp.ne.s32.totalorder %s66, %s68
    %p75 = scmp.eq.s32.totalorder %s16, 1
    %p76 = por %p74, %p75
    %p77 = scmp.ne.s32.totalorder %s68, %s69
    %p78 = scmp.eq.s32.totalorder %s16, 0
    %p79 = por %p77, %p78
    %p80 = scmp.ne.s32.totalorder %s68, %s69
    %p81 = scmp.eq.s32.totalorder %s17, 1
    %p82 = por %p80, %p81
    %p84 = scmp.ne.s32.totalorder %s69, %s83
    %p85 = scmp.eq.s32.totalorder %s17, 0
    %p86 = por %p84, %p85
    %s87 = ssub.s32 %s11, %s18
    %p88 = scmp.eq.s32.totalorder %s87, 0
    %s90 = sadd.s32 %s89, 1
    %s91 = scalar_select %p88, %s89, %s90
    %p94 = pneg %p88
    %p95 = scmp.eq.s32.totalorder %s11, 1
    %p96 = por %p94, %p95
    %p97 = scmp.ne.s32.totalorder %s89, %s92
    %p98 = scmp.eq.s32.totalorder %s11, 0
    %p99 = por %p97, %p98
    %p100 = scmp.ne.s32.totalorder %s89, %s92
    %p101 = scmp.eq.s32.totalorder %s16, 1
    %p102 = por %p100, %p101
    %p103 = scmp.ne.s32.totalorder %s92, %s93
    %p104 = scmp.eq.s32.totalorder %s16, 0
    %p105 = por %p103, %p104
    %p106 = scmp.ne.s32.totalorder %s92, %s93
    %p107 = scmp.eq.s32.totalorder %s17, 1
    %p108 = por %p106, %p107
    %p110 = scmp.ne.s32.totalorder %s93, %s109
    %p111 = scmp.eq.s32.totalorder %s17, 0
    %p112 = por %p110, %p111
    %s113 = ssub.s32 %s11, %s18
    %p114 = scmp.eq.s32.totalorder %s113, 0
    %s116 = sadd.s32 %s115, 1
    %s117 = scalar_select %p114, %s115, %s116
    %p120 = pneg %p114
    %p121 = scmp.eq.s32.totalorder %s11, 1
    %p122 = por %p120, %p121
    %p123 = scmp.ne.s32.totalorder %s115, %s118
    %p124 = scmp.eq.s32.totalorder %s11, 0
    %p125 = por %p123, %p124
    %p126 = scmp.ne.s32.totalorder %s115, %s118
    %p127 = scmp.eq.s32.totalorder %s16, 1
    %p128 = por %p126, %p127
    %p129 = scmp.ne.s32.totalorder %s118, %s119
    %p130 = scmp.eq.s32.totalorder %s16, 0
    %p131 = por %p129, %p130
    %p132 = scmp.ne.s32.totalorder %s118, %s119
    %p133 = scmp.eq.s32.totalorder %s17, 1
    %p134 = por %p132, %p133
    %p136 = scmp.ne.s32.totalorder %s119, %s135
    %p137 = scmp.eq.s32.totalorder %s17, 0
    %p138 = por %p136, %p137
    %p139 = scmp.le.s32.totalorder 1, %s11
    %p140 = scmp.lt.s32.totalorder %s11, 3
    %p141 = pnand %p139, %p140
    %p142 = pneg %p141
    // Predicated region
    $region9: #{tpu_custom_call.1} parent=5 // pred_check
      _
    $region10: #{tpu_custom_call.1} parent=5 // pred_check_branch
      %144 = sbr.rel (%p141) target = $region12
    $region11: #{tpu_custom_call.1} parent=5 // pred_region
      %s145 = ssub.s32 %s11, 1
      // Predicated region
      $region13: #{tpu_custom_call.1} parent=11 // pred_check
        %p146 = pneg %p58
      $region14: #{tpu_custom_call.1} parent=11 // pred_check_branch
        %148 = sbr.rel (%p146) target = $region16
      $region15: #{tpu_custom_call.1} parent=11 // pred_region
        _
      $region16: #{tpu_custom_call.1} parent=11 // pred_fallthru
        _
      // Predicated region
      $region17: #{tpu_custom_call.1} parent=11 // pred_check
        %p149 = pneg %p79
      $region18: #{tpu_custom_call.1} parent=11 // pred_check_branch
        %151 = sbr.rel (%p149) target = $region20
      $region19: #{tpu_custom_call.1} parent=11 // pred_region
        _
      $region20: #{tpu_custom_call.1} parent=11 // pred_fallthru
        _
    $region12: #{tpu_custom_call.1} parent=5 // pred_fallthru
      _
    %p152 = scmp.lt.s32.totalorder %s11, 2
    // Predicated region
    $region21: #{tpu_custom_call.1} parent=5 // pred_check
      %p153 = pneg %p152
    $region22: #{tpu_custom_call.1} parent=5 // pred_check_branch
      %155 = sbr.rel (%p153) target = $region24
    $region23: #{tpu_custom_call.1} parent=5 // pred_region
      // Predicated region
      $region25: #{tpu_custom_call.1} parent=23 // pred_check
        %p156 = pneg %p31
      $region26: #{tpu_custom_call.1} parent=23 // pred_check_branch
        %158 = sbr.rel (%p156) target = $region28
      $region27: #{tpu_custom_call.1} parent=23 // pred_region
        %s159 = smul.u32 8, %s11
        %p160 = scmp.lt.s32.totalorder %s159, 15
        %s161 = scalar_select %p160, %s159, 15
        %s162 = smul.addr %s161, 8
        %s163 = scalar_lea.vmem %s0, %s162
        %s164 = smul.u32 8, %s11
      $region28: #{tpu_custom_call.1} parent=23 // pred_fallthru
        _
    $region24: #{tpu_custom_call.1} parent=5 // pred_fallthru
      _
    %p165 = scmp.le.s32.totalorder 1, %s11
    %p166 = scmp.lt.s32.totalorder %s11, 3
    %p167 = pnand %p165, %p166
    %p168 = pneg %p167
    // Predicated region
    $region29: #{tpu_custom_call.1} parent=5 // pred_check
      _
    $region30: #{tpu_custom_call.1} parent=5 // pred_check_branch
      %170 = sbr.rel (%p167) target = $region32
    $region31: #{tpu_custom_call.1} parent=5 // pred_region
      %s171 = ssub.s32 %s11, 1
      %s172 = smul.u32 8, %s16
      %p173 = scmp.lt.s32.totalorder %s172, 15
      %s174 = scalar_select %p173, %s172, 15
      %s175 = smul.addr %s174, 8
      %s176 = scalar_lea.vmem %s0, %s175
      %p177 = pneg %p37
      %p178 = pneg %p34
      %p179 = pneg %p58
      %p180 = pneg %p55
      %p181 = pneg %p79
      %p182 = pneg %p76
      %p183 = pneg %p105
      %p184 = pneg %p102
      %s185 = smul.u32 8, %s16
      %p186 = scmp.lt.s32.totalorder %s185, 15
      %s187 = scalar_select %p186, %s185, 15
      %s188 = smul.addr %s187, 8
      %s189 = scalar_lea.vmem %s3, %s188
      %p190 = pneg %p131
      %p191 = pneg %p128
      %s192 = smul.u32 8, %s16
      %p193 = scmp.lt.s32.totalorder %s192, 15
      %s194 = scalar_select %p193, %s192, 15
      %s195 = smul.addr %s194, 8
      %s196 = scalar_lea.vmem %s4, %s195
      %s197 = smul.u32 8, %s16
      %p198 = scmp.lt.s32.totalorder %s197, 15
      %s199 = scalar_select %p198, %s197, 15
      %s200 = smul.addr %s199, 8
      %s201 = scalar_lea.vmem %s0, %s200
      %s202 = smul.u32 8, %s16
      %s203 = smul.u32 8, %s16
      %p204 = scmp.lt.s32.totalorder %s203, 15
      %s205 = scalar_select %p204, %s203, 15
      %s206 = smul.addr %s205, 8
      %s207 = scalar_lea.vmem %s3, %s206
      %s208 = smul.u32 8, %s16
      %s209 = smul.u32 8, %s16
      %p210 = scmp.lt.s32.totalorder %s209, 15
      %s211 = scalar_select %p210, %s209, 15
      %s212 = smul.addr %s211, 8
      %s213 = scalar_lea.vmem %s4, %s212
      %s214 = smul.u32 8, %s16
      %v215 = vld [vmem:[%s201] sm:$0xff]
      %v216 = vld [vmem:[%s201 + $0x8] sm:$0xff]
      %v217 = vld [vmem:[%s201 + $0x10] sm:$0xff]
      %v218 = vld [vmem:[%s201 + $0x18] sm:$0xff]
      %v219 = vld [vmem:[%s201 + $0x20] sm:$0xff]
      %v220 = vld [vmem:[%s201 + $0x28] sm:$0xff]
      %v221 = vld [vmem:[%s201 + $0x30] sm:$0xff]
      %v222 = vld [vmem:[%s201 + $0x38] sm:$0xff]
      %v223 = vld [vmem:[%s1] sm:$0xff]
      %v224 = vld [vmem:[%s1 + $0x8] sm:$0xff]
      %v225 = vld [vmem:[%s1 + $0x10] sm:$0xff]
      %v226 = vld [vmem:[%s1 + $0x18] sm:$0xff]
      %vm227 = vcmask 261120
      %v229 = vsel %vm227, %v215, 0
      %v232 = vsel %vm227, %v216, 0
      %v235 = vsel %vm227, %v217, 0
      %v238 = vsel %vm227, %v218, 0
      %v241 = vsel %vm227, %v219, 0
      %v244 = vsel %vm227, %v220, 0
      %v247 = vsel %vm227, %v221, 0
      %v250 = vsel %vm227, %v222, 0
      %252 = vmatpush.msra.mxu0 0.0
      %253 = vmatpush.msra.mxu0 0.0
      %254 = vmatpush.msra.mxu0 0.0
      %255 = vmatpush.msra.mxu0 0.0
      %256 = vmatpush.msra.mxu0 0.0
      %257 = vmatpush.msra.mxu0 0.0
      %258 = vmatpush.msra.mxu0 0.0
      %259 = vmatpush.msra.mxu0 0.0
      %260 = vmatpush.msra.mxu0 0.0
      %261 = vmatpush.msra.mxu0 0.0
      %262 = vmatpush.msra.mxu0 0.0
      %263 = vmatpush.msra.mxu0 0.0
      %264 = vmatpush.msra.mxu0 %v226
      %265 = vmatpush.msra.mxu0 %v225
      %266 = vmatpush.msra.mxu0 %v224
      %267 = vmatpush.msra.mxu0 %v223
      %268 = vmatmul.f32.gmra.mxu0 %v229
      %v269 = vpop.f32.mrf.mxu0
      %v270 = vadd.f32 0.0, %v269
      %271 = vmatmul.f32.gmra.mxu0 %v232
      %v272 = vpop.f32.mrf.mxu0
      %v273 = vadd.f32 0.0, %v272
      %274 = vmatmul.f32.gmra.mxu0 %v235
      %v275 = vpop.f32.mrf.mxu0
      %v276 = vadd.f32 0.0, %v275
      %277 = vmatmul.f32.gmra.mxu0 %v238
      %v278 = vpop.f32.mrf.mxu0
      %v279 = vadd.f32 0.0, %v278
      %280 = vmatmul.f32.gmra.mxu0 %v241
      %v281 = vpop.f32.mrf.mxu0
      %v282 = vadd.f32 0.0, %v281
      %283 = vmatmul.f32.gmra.mxu0 %v244
      %v284 = vpop.f32.mrf.mxu0
      %v285 = vadd.f32 0.0, %v284
      %286 = vmatmul.f32.gmra.mxu0 %v247
      %v287 = vpop.f32.mrf.mxu0
      %v288 = vadd.f32 0.0, %v287
      %289 = vmatmul.f32.gmra.mxu0 %v250
      %v290 = vpop.f32.mrf.mxu0
      %v291 = vadd.f32 0.0, %v290
      %292 = vdwg.mxu0
      %v293 = vld [vmem:[%s2] sm:$0xff]
      %v294 = vld [vmem:[%s2 + $0x8] sm:$0xff]
      %v295 = vld [vmem:[%s2 + $0x10] sm:$0xff]
      %v296 = vld [vmem:[%s2 + $0x18] sm:$0xff]
      %v298 = vsel %vm227, %v270, 0
      %v301 = vsel %vm227, %v273, 0
      %v304 = vsel %vm227, %v276, 0
      %v307 = vsel %vm227, %v279, 0
      %v310 = vsel %vm227, %v282, 0
      %v313 = vsel %vm227, %v285, 0
      %v316 = vsel %vm227, %v288, 0
      %v319 = vsel %vm227, %v291, 0
      %321 = vmatpush.msra.mxu0 0.0
      %322 = vmatpush.msra.mxu0 0.0
      %323 = vmatpush.msra.mxu0 0.0
      %324 = vmatpush.msra.mxu0 0.0
      %325 = vmatpush.msra.mxu0 0.0
      %326 = vmatpush.msra.mxu0 0.0
      %327 = vmatpush.msra.mxu0 0.0
      %328 = vmatpush.msra.mxu0 0.0
      %329 = vmatpush.msra.mxu0 0.0
      %330 = vmatpush.msra.mxu0 0.0
      %331 = vmatpush.msra.mxu0 0.0
      %332 = vmatpush.msra.mxu0 0.0
      %333 = vmatpush.msra.mxu0 %v296
      %334 = vmatpush.msra.mxu0 %v295
      %335 = vmatpush.msra.mxu0 %v294
      %336 = vmatpush.msra.mxu0 %v293
      %337 = vmatmul.f32.gmra.mxu0 %v298
      %v338 = vpop.f32.mrf.mxu0
      %v339 = vadd.f32 0.0, %v338
      %340 = vmatmul.f32.gmra.mxu0 %v301
      %v341 = vpop.f32.mrf.mxu0
      %v342 = vadd.f32 0.0, %v341
      %343 = vmatmul.f32.gmra.mxu0 %v304
      %v344 = vpop.f32.mrf.mxu0
      %v345 = vadd.f32 0.0, %v344
      %346 = vmatmul.f32.gmra.mxu0 %v307
      %v347 = vpop.f32.mrf.mxu0
      %v348 = vadd.f32 0.0, %v347
      %349 = vmatmul.f32.gmra.mxu0 %v310
      %v350 = vpop.f32.mrf.mxu0
      %v351 = vadd.f32 0.0, %v350
      %352 = vmatmul.f32.gmra.mxu0 %v313
      %v353 = vpop.f32.mrf.mxu0
      %v354 = vadd.f32 0.0, %v353
      %355 = vmatmul.f32.gmra.mxu0 %v316
      %v356 = vpop.f32.mrf.mxu0
      %v357 = vadd.f32 0.0, %v356
      %358 = vmatmul.f32.gmra.mxu0 %v319
      %v359 = vpop.f32.mrf.mxu0
      %v360 = vadd.f32 0.0, %v359
      %361 = vdwg.mxu0
      %vm362 = vcmask 64512
      %363 = vst.msk [vmem:[%s213] sm:$0xff] %vm362, %v339
      %364 = vst.msk [vmem:[%s213 + $0x8] sm:$0xff] %vm362, %v342
      %365 = vst.msk [vmem:[%s213 + $0x10] sm:$0xff] %vm362, %v345
      %366 = vst.msk [vmem:[%s213 + $0x18] sm:$0xff] %vm362, %v348
      %367 = vst.msk [vmem:[%s213 + $0x20] sm:$0xff] %vm362, %v351
      %368 = vst.msk [vmem:[%s213 + $0x28] sm:$0xff] %vm362, %v354
      %369 = vst.msk [vmem:[%s213 + $0x30] sm:$0xff] %vm362, %v357
      %370 = vst.msk [vmem:[%s213 + $0x38] sm:$0xff] %vm362, %v360
      %371 = vst.msk [vmem:[%s207] sm:$0xff] %vm362, %v270
      %372 = vst.msk [vmem:[%s207 + $0x8] sm:$0xff] %vm362, %v273
      %373 = vst.msk [vmem:[%s207 + $0x10] sm:$0xff] %vm362, %v276
      %374 = vst.msk [vmem:[%s207 + $0x18] sm:$0xff] %vm362, %v279
      %375 = vst.msk [vmem:[%s207 + $0x20] sm:$0xff] %vm362, %v282
      %376 = vst.msk [vmem:[%s207 + $0x28] sm:$0xff] %vm362, %v285
      %377 = vst.msk [vmem:[%s207 + $0x30] sm:$0xff] %vm362, %v288
      %378 = vst.msk [vmem:[%s207 + $0x38] sm:$0xff] %vm362, %v291
      %vm379 = vcmask 72768
      %380 = vst.msk [vmem:[%s207] sm:$0xff] %vm379, 1.0
      %381 = vst.msk [vmem:[%s207 + $0x8] sm:$0xff] %vm379, 1.0
      %382 = vst.msk [vmem:[%s207 + $0x10] sm:$0xff] %vm379, 1.0
      %383 = vst.msk [vmem:[%s207 + $0x18] sm:$0xff] %vm379, 1.0
      %384 = vst.msk [vmem:[%s207 + $0x20] sm:$0xff] %vm379, 1.0
      %385 = vst.msk [vmem:[%s207 + $0x28] sm:$0xff] %vm379, 1.0
      %386 = vst.msk [vmem:[%s207 + $0x30] sm:$0xff] %vm379, 1.0
      %387 = vst.msk [vmem:[%s207 + $0x38] sm:$0xff] %vm379, 1.0
      %388 = vrot.lane.b32.xlu0 %v270, 1
      %v389 = vpop.permute.xlu0 %388
      %390 = vrot.lane.b32.xlu0 %v273, 1
      %v391 = vpop.permute.xlu0 %390
      %392 = vrot.lane.b32.xlu0 %v276, 1
      %v393 = vpop.permute.xlu0 %392
      %394 = vrot.lane.b32.xlu0 %v279, 1
      %v395 = vpop.permute.xlu0 %394
      %396 = vrot.lane.b32.xlu0 %v282, 1
      %v397 = vpop.permute.xlu0 %396
      %398 = vrot.lane.b32.xlu0 %v285, 1
      %v399 = vpop.permute.xlu0 %398
      %400 = vrot.lane.b32.xlu0 %v288, 1
      %v401 = vpop.permute.xlu0 %400
      %402 = vrot.lane.b32.xlu0 %v291, 1
      %v403 = vpop.permute.xlu0 %402
      %vm412 = vcmask 138312
      %413 = vst.msk [vmem:[%s207] sm:$0xff] %vm412, %v389
      %414 = vst.msk [vmem:[%s207 + $0x8] sm:$0xff] %vm412, %v391
      %415 = vst.msk [vmem:[%s207 + $0x10] sm:$0xff] %vm412, %v393
      %416 = vst.msk [vmem:[%s207 + $0x18] sm:$0xff] %vm412, %v395
      %417 = vst.msk [vmem:[%s207 + $0x20] sm:$0xff] %vm412, %v397
      %418 = vst.msk [vmem:[%s207 + $0x28] sm:$0xff] %vm412, %v399
      %419 = vst.msk [vmem:[%s207 + $0x30] sm:$0xff] %vm412, %v401
      %420 = vst.msk [vmem:[%s207 + $0x38] sm:$0xff] %vm412, %v403
      %vm421 = vcmask 146568
      %422 = vst.msk [vmem:[%s207] sm:$0xff] %vm421, 1.0
      %423 = vst.msk [vmem:[%s207 + $0x8] sm:$0xff] %vm421, 1.0
      %424 = vst.msk [vmem:[%s207 + $0x10] sm:$0xff] %vm421, 1.0
      %425 = vst.msk [vmem:[%s207 + $0x18] sm:$0xff] %vm421, 1.0
      %426 = vst.msk [vmem:[%s207 + $0x20] sm:$0xff] %vm421, 1.0
      %427 = vst.msk [vmem:[%s207 + $0x28] sm:$0xff] %vm421, 1.0
      %428 = vst.msk [vmem:[%s207 + $0x30] sm:$0xff] %vm421, 1.0
      %429 = vst.msk [vmem:[%s207 + $0x38] sm:$0xff] %vm421, 1.0
      %430 = vrot.lane.b32.xlu0 %v270, 2
      %v431 = vpop.permute.xlu0 %430
      %432 = vrot.lane.b32.xlu0 %v273, 2
      %v433 = vpop.permute.xlu0 %432
      %434 = vrot.lane.b32.xlu0 %v276, 2
      %v435 = vpop.permute.xlu0 %434
      %436 = vrot.lane.b32.xlu0 %v279, 2
      %v437 = vpop.permute.xlu0 %436
      %438 = vrot.lane.b32.xlu0 %v282, 2
      %v439 = vpop.permute.xlu0 %438
      %440 = vrot.lane.b32.xlu0 %v285, 2
      %v441 = vpop.permute.xlu0 %440
      %442 = vrot.lane.b32.xlu0 %v288, 2
      %v443 = vpop.permute.xlu0 %442
      %444 = vrot.lane.b32.xlu0 %v291, 2
      %v445 = vpop.permute.xlu0 %444
      %vm454 = vcmask 212112
      %455 = vst.msk [vmem:[%s207] sm:$0xff] %vm454, %v431
      %456 = vst.msk [vmem:[%s207 + $0x8] sm:$0xff] %vm454, %v433
      %457 = vst.msk [vmem:[%s207 + $0x10] sm:$0xff] %vm454, %v435
      %458 = vst.msk [vmem:[%s207 + $0x18] sm:$0xff] %vm454, %v437
      %459 = vst.msk [vmem:[%s207 + $0x20] sm:$0xff] %vm454, %v439
      %460 = vst.msk [vmem:[%s207 + $0x28] sm:$0xff] %vm454, %v441
      %461 = vst.msk [vmem:[%s207 + $0x30] sm:$0xff] %vm454, %v443
      %462 = vst.msk [vmem:[%s207 + $0x38] sm:$0xff] %vm454, %v445
      %vm463 = vcmask 220368
      %464 = vst.msk [vmem:[%s207] sm:$0xff] %vm463, 1.0
      %465 = vst.msk [vmem:[%s207 + $0x8] sm:$0xff] %vm463, 1.0
      %466 = vst.msk [vmem:[%s207 + $0x10] sm:$0xff] %vm463, 1.0
      %467 = vst.msk [vmem:[%s207 + $0x18] sm:$0xff] %vm463, 1.0
      %468 = vst.msk [vmem:[%s207 + $0x20] sm:$0xff] %vm463, 1.0
      %469 = vst.msk [vmem:[%s207 + $0x28] sm:$0xff] %vm463, 1.0
      %470 = vst.msk [vmem:[%s207 + $0x30] sm:$0xff] %vm463, 1.0
      %471 = vst.msk [vmem:[%s207 + $0x38] sm:$0xff] %vm463, 1.0
      %472 = vrot.lane.b32.xlu0 %v270, 3
      %v473 = vpop.permute.xlu0 %472
      %474 = vrot.lane.b32.xlu0 %v273, 3
      %v475 = vpop.permute.xlu0 %474
      %476 = vrot.lane.b32.xlu0 %v276, 3
      %v477 = vpop.permute.xlu0 %476
      %478 = vrot.lane.b32.xlu0 %v279, 3
      %v479 = vpop.permute.xlu0 %478
      %480 = vrot.lane.b32.xlu0 %v282, 3
      %v481 = vpop.permute.xlu0 %480
      %482 = vrot.lane.b32.xlu0 %v285, 3
      %v483 = vpop.permute.xlu0 %482
      %484 = vrot.lane.b32.xlu0 %v288, 3
      %v485 = vpop.permute.xlu0 %484
      %486 = vrot.lane.b32.xlu0 %v291, 3
      %v487 = vpop.permute.xlu0 %486
      %vm496 = vcmask 285912
      %497 = vst.msk [vmem:[%s207] sm:$0xff] %vm496, %v473
      %498 = vst.msk [vmem:[%s207 + $0x8] sm:$0xff] %vm496, %v475
      %499 = vst.msk [vmem:[%s207 + $0x10] sm:$0xff] %vm496, %v477
      %500 = vst.msk [vmem:[%s207 + $0x18] sm:$0xff] %vm496, %v479
      %501 = vst.msk [vmem:[%s207 + $0x20] sm:$0xff] %vm496, %v481
      %502 = vst.msk [vmem:[%s207 + $0x28] sm:$0xff] %vm496, %v483
      %503 = vst.msk [vmem:[%s207 + $0x30] sm:$0xff] %vm496, %v485
      %504 = vst.msk [vmem:[%s207 + $0x38] sm:$0xff] %vm496, %v487
      %vm505 = vcmask 294168
      %506 = vst.msk [vmem:[%s207] sm:$0xff] %vm505, 1.0
      %507 = vst.msk [vmem:[%s207 + $0x8] sm:$0xff] %vm505, 1.0
      %508 = vst.msk [vmem:[%s207 + $0x10] sm:$0xff] %vm505, 1.0
      %509 = vst.msk [vmem:[%s207 + $0x18] sm:$0xff] %vm505, 1.0
      %510 = vst.msk [vmem:[%s207 + $0x20] sm:$0xff] %vm505, 1.0
      %511 = vst.msk [vmem:[%s207 + $0x28] sm:$0xff] %vm505, 1.0
      %512 = vst.msk [vmem:[%s207 + $0x30] sm:$0xff] %vm505, 1.0
      %513 = vst.msk [vmem:[%s207 + $0x38] sm:$0xff] %vm505, 1.0
      %s514 = smul.u32 8, %s16
      %p515 = scmp.lt.s32.totalorder %s514, 15
      %s516 = scalar_select %p515, %s514, 15
      %s517 = smul.addr %s516, 8
      %s518 = scalar_lea.vmem %s3, %s517
      %s519 = smul.u32 8, %s16
      %p520 = scmp.lt.s32.totalorder %s519, 15
      %s521 = scalar_select %p520, %s519, 15
      %s522 = smul.addr %s521, 8
      %s523 = scalar_lea.vmem %s4, %s522
      // Predicated region
      $region33: #{tpu_custom_call.1} parent=31 // pred_check
        %p524 = pneg %p102
      $region34: #{tpu_custom_call.1} parent=31 // pred_check_branch
        %526 = sbr.rel (%p524) target = $region36
      $region35: #{tpu_custom_call.1} parent=31 // pred_region
        %s527 = smul.u32 8, %s16
      $region36: #{tpu_custom_call.1} parent=31 // pred_fallthru
        _
      // Predicated region
      $region37: #{tpu_custom_call.1} parent=31 // pred_check
        %p528 = pneg %p128
      $region38: #{tpu_custom_call.1} parent=31 // pred_check_branch
        %530 = sbr.rel (%p528) target = $region40
      $region39: #{tpu_custom_call.1} parent=31 // pred_region
        %s531 = smul.u32 8, %s16
      $region40: #{tpu_custom_call.1} parent=31 // pred_fallthru
        _
    $region32: #{tpu_custom_call.1} parent=5 // pred_fallthru
      _
    %p532 = scmp.le.s32.totalorder 2, %s11
    // Predicated region
    $region41: #{tpu_custom_call.1} parent=5 // pred_check
      %p533 = pneg %p532
    $region42: #{tpu_custom_call.1} parent=5 // pred_check_branch
      %535 = sbr.rel (%p533) target = $region44
    $region43: #{tpu_custom_call.1} parent=5 // pred_region
      %s536 = ssub.s32 %s11, 2
      // Predicated region
      $region45: #{tpu_custom_call.1} parent=43 // pred_check
        %p537 = pneg %p108
      $region46: #{tpu_custom_call.1} parent=43 // pred_check_branch
        %539 = sbr.rel (%p537) target = $region48
      $region47: #{tpu_custom_call.1} parent=43 // pred_region
        %s540 = smul.u32 8, %s17
        %p541 = scmp.lt.s32.totalorder %s540, 15
        %s542 = scalar_select %p541, %s540, 15
        %s543 = smul.addr %s542, 8
        %s544 = scalar_lea.vmem %s3, %s543
      $region48: #{tpu_custom_call.1} parent=43 // pred_fallthru
        _
      // Predicated region
      $region49: #{tpu_custom_call.1} parent=43 // pred_check
        %p545 = pneg %p134
      $region50: #{tpu_custom_call.1} parent=43 // pred_check_branch
        %547 = sbr.rel (%p545) target = $region52
      $region51: #{tpu_custom_call.1} parent=43 // pred_region
        %s548 = smul.u32 8, %s17
        %p549 = scmp.lt.s32.totalorder %s548, 15
        %s550 = scalar_select %p549, %s548, 15
        %s551 = smul.addr %s550, 8
        %s552 = scalar_lea.vmem %s4, %s551
      $region52: #{tpu_custom_call.1} parent=43 // pred_fallthru
        _
    $region44: #{tpu_custom_call.1} parent=5 // pred_fallthru
      _
  $region6: #{tpu_custom_call.1} parent=0 // loop_footer
    %s15 = sadd.s32 1, %s11
  $region7: #{tpu_custom_call.1} parent=0 // loop_footer_branch
    %10 = sbr.rel target = $region3
  $region8: #{tpu_custom_call.1} parent=0 // loop_exit
    _

</llo_original>
